<compile_context>
chip_gen: v7x
topology: tpu7x:2x2x1
jax: 0.10.0
libtpu: 0.0.40
codegen_flags: <defaults>
</compile_context>

<pallas_src>
import jax
import jax.numpy as jnp
import numpy as np
from jax.experimental import pallas as pl
from jax.experimental.pallas import tpu as pltpu


def _round_up(x, m):
    return ((x + m - 1) // m) * m


def _arrays_bytes(*arrays):
    return int(sum(int(a.size) * a.dtype.itemsize for a in arrays))


def _mosaic_params(need_bytes, dimension_semantics=None):
    """Raise the scoped-VMEM limit only when the per-chip defaults (16 MiB v5e /
    32 MiB v6e, v7x) would be too small; stay under the v7x 64 MiB physical budget."""
    limit = None
    if need_bytes > 12 * (2 ** 20):
        limit = int(min(60 * (2 ** 20), 2 * need_bytes))
    return pltpu.CompilerParams(dimension_semantics=dimension_semantics,
                                vmem_limit_bytes=limit)


# -----------------------------------------------------------------------------
# Shared in-kernel LSTM cell math (f32 gates / cell state; weights in param dtype)
# -----------------------------------------------------------------------------
def _lstm_cell_math(emb, h0, c0, w_ih_t, w_hh_t, bias):
    """emb (B,E) param_dtype; h0,c0 (B,Hp) f32; w_ih_t (E,4Hp); w_hh_t (Hp,4Hp);
    bias (1,4Hp) f32.  Gate order i,f,g,o; Hp is the lane-padded hidden size."""
    Hp = h0.shape[-1]
    wdt = w_ih_t.dtype
    # gates = [emb, ctx] @ W_ih^T + h0 @ W_hh^T + (b_ih + b_hh); ctx == 0 so the
    # ctx half of W_ih is dropped.  f32 accumulation on the MXU.
    gates = (jnp.dot(emb, w_ih_t, preferred_element_type=jnp.float32)
             + jnp.dot(h0.astype(wdt), w_hh_t, preferred_element_type=jnp.float32)
             + bias)                                            # (B, 4Hp) f32
    i_g = jax.nn.sigmoid(gates[:, 0 * Hp:1 * Hp])               # lane-aligned slices
    f_g = jax.nn.sigmoid(gates[:, 1 * Hp:2 * Hp])
    g_g = jnp.tanh(gates[:, 2 * Hp:3 * Hp])
    o_g = jax.nn.sigmoid(gates[:, 3 * Hp:4 * Hp])
    c_new = f_g * c0 + i_g * g_g                                # f32 cell math
    h_new = o_g * jnp.tanh(c_new)
    return h_new, c_new


# -----------------------------------------------------------------------------
# Kernel A: fused single-step decoder (small O) — no grid, one invocation
# -----------------------------------------------------------------------------
def _decoder_fused_kernel(emb_ref, h0_ref, c0_ref, w_ih_ref, w_hh_ref, bias_ref,
                          w_fc_ref, b_fc_ref,
                          pred_ref, h_ref, c_ref):
    h_new, c_new = _lstm_cell_math(emb_ref[...], h0_ref[...], c0_ref[...],
                                   w_ih_ref[...], w_hh_ref[...], bias_ref[...])
    h_ref[...] = h_new
    c_ref[...] = c_new
    # prediction = cat(h_new, ctx) @ W_fc^T + b_fc with ctx == 0 -> h half only.
    pred_ref[...] = (jnp.dot(h_new.astype(w_fc_ref.dtype), w_fc_ref[...],
                             preferred_element_type=jnp.float32)
                     + b_fc_ref[...])


def decoder_step_fused(embedded, h0, c0, w_ih_t, w_hh_t, bias, w_fc_t, b_fc):
    Bp, Hp = h0.shape
    Op = w_fc_t.shape[1]
    need = (_arrays_bytes(embedded, h0, c0, w_ih_t, w_hh_t, bias, w_fc_t, b_fc)
            + 4 * (Bp * Op + 2 * Bp * Hp))
    return pl.pallas_call(
        _decoder_fused_kernel,
        out_shape=(
            jax.ShapeDtypeStruct((Bp, Op), jnp.float32),   # prediction (lane-dense)
            jax.ShapeDtypeStruct((Bp, Hp), jnp.float32),   # h_new
            jax.ShapeDtypeStruct((Bp, Hp), jnp.float32),   # c_new
        ),
        compiler_params=_mosaic_params(need),
    )(embedded, h0, c0, w_ih_t, w_hh_t, bias, w_fc_t, b_fc)


# -----------------------------------------------------------------------------
# Kernel B1: LSTM cell only (large-O path) — no grid
# -----------------------------------------------------------------------------
def _lstm_cell_kernel(emb_ref, h0_ref, c0_ref, w_ih_ref, w_hh_ref, bias_ref,
                      h_ref, c_ref, h_cast_ref):
    h_new, c_new = _lstm_cell_math(emb_ref[...], h0_ref[...], c0_ref[...],
                                   w_ih_ref[...], w_hh_ref[...], bias_ref[...])
    h_ref[...] = h_new
    c_ref[...] = c_new
    h_cast_ref[...] = h_new.astype(h_cast_ref.dtype)       # pre-cast once for fc


def lstm_cell_pallas(embedded, h0, c0, w_ih_t, w_hh_t, bias, cast_dtype):
    Bp, Hp = h0.shape
    need = _arrays_bytes(embedded, h0, c0, w_ih_t, w_hh_t, bias) + 3 * 4 * Bp * Hp
    return pl.pallas_call(
        _lstm_cell_kernel,
        out_shape=(
            jax.ShapeDtypeStruct((Bp, Hp), jnp.float32),
            jax.ShapeDtypeStruct((Bp, Hp), jnp.float32),
            jax.ShapeDtypeStruct((Bp, Hp), cast_dtype),
        ),
        compiler_params=_mosaic_params(need),
    )(embedded, h0, c0, w_ih_t, w_hh_t, bias)


# -----------------------------------------------------------------------------
# Kernel B2: column-tiled fc projection (large-O path) — 1-D "parallel" grid
# -----------------------------------------------------------------------------
def _fc_kernel(h_ref, w_fc_ref, b_fc_ref, pred_ref):
    pred_ref[...] = (jnp.dot(h_ref[...], w_fc_ref[...],
                             preferred_element_type=jnp.float32)
                     + b_fc_ref[...])


def fc_out_pallas(h_cast, w_fc_t, b_fc, o_tile):
    Bp, Hp = h_cast.shape
    Op = w_fc_t.shape[1]
    assert Op % o_tile == 0
    grid = (Op // o_tile,)
    tile_bytes = (Hp * o_tile * w_fc_t.dtype.itemsize
                  + o_tile * b_fc.dtype.itemsize + Bp * o_tile * 4)
    need = _arrays_bytes(h_cast) + 3 * tile_bytes          # double-buffered tiles
    grid_spec = pltpu.PrefetchScalarGridSpec(
        num_scalar_prefetch=0,
        grid=grid,
        in_specs=[
            pl.BlockSpec((Bp, Hp), lambda j: (0, 0)),       # h: constant, VMEM-resident
            # TODO(synk): on v7x, sweep pipeline_mode=pl.Buffered(3) on this spec if
            # per-tile DMA issue latency is exposed after enlarging o_tile.
            pl.BlockSpec((Hp, o_tile), lambda j: (0, j)),   # W_fc column tile
            pl.BlockSpec((1, o_tile), lambda j: (0, j)),    # bias column tile
        ],
        out_specs=pl.BlockSpec((Bp, o_tile), lambda j: (0, j)),
    )
    return pl.pallas_call(
        _fc_kernel,
        out_shape=jax.ShapeDtypeStruct((Bp, Op), jnp.float32),
        grid_spec=grid_spec,
        # No cross-tile dependency -> "parallel": on v7x the fc tiles shard across
        # the two TensorCores (the LSTM cell lives in its own kernel).
        compiler_params=_mosaic_params(need, dimension_semantics=("parallel",)),
    )(h_cast, w_fc_t, b_fc)


# -----------------------------------------------------------------------------
# Module wrapper: mirrors Decoder_with_attention.forward
# (attention=None, num_layers=1, rnn_type='LSTM', dropout in eval mode -> identity)
# -----------------------------------------------------------------------------
class DecoderWithAttentionPallas:
    def __init__(self, output_dim, embedding_size, hidden_size, key,
                 param_dtype=jnp.bfloat16, o_tile=512, fuse_max_o=2048):
        self.output_dim = output_dim
        self.embedding_size = embedding_size
        self.hidden_size = hidden_size
        self.param_dtype = param_dtype

        E, H, O = embedding_size, hidden_size, output_dim
        Hp = self.h_pad = _round_up(H, 128)

        # fc tiling: grid-free fused kernel for small O; column-tiled projection
        # (512-wide lane-dense tiles, v7x-shardable) for vocab-sized O.
        o_pad128 = _round_up(O, 128)
        self.fused = o_pad128 <= fuse_max_o
        if self.fused:
            self.o_tile = self.o_pad = o_pad128
        else:
            self.o_tile = o_tile
            self.o_pad = _round_up(O, o_tile)
        Op = self.o_pad

        ks = jax.random.split(key, 7)
        scale = 0.1
        # f32 master parameters in PyTorch layouts (used by the pure-JAX reference).
        self.embedding_w = scale * jax.random.normal(ks[0], (O, E), jnp.float32)
        self.w_ih = scale * jax.random.normal(ks[1], (4 * H, E + H), jnp.float32)
        self.w_hh = scale * jax.random.normal(ks[2], (4 * H, H), jnp.float32)
        self.b_ih = scale * jax.random.normal(ks[3], (4 * H,), jnp.float32)
        self.b_hh = scale * jax.random.normal(ks[4], (4 * H,), jnp.float32)
        self.w_fc = scale * jax.random.normal(ks[5], (O, 2 * H), jnp.float32)
        self.b_fc = scale * jax.random.normal(ks[6], (O,), jnp.float32)

        # --- kernel-ready parameters, prepared ONCE (hoisted out of the step call) ---
        # Gate order i,f,g,o; each gate block padded H -> Hp so the in-kernel gate
        # slices gates[:, k*Hp:(k+1)*Hp] are lane (128) aligned.  Padded columns see
        # zero weight + zero bias, so the padded part of h/c stays exactly 0.
        self.embedding = self.embedding_w.astype(param_dtype)

        w_ih_e_t = self.w_ih[:, :E].T.reshape(E, 4, H)              # emb half only
        w_ih_e_t = jnp.pad(w_ih_e_t, ((0, 0), (0, 0), (0, Hp - H)))
        self.w_ih_e_t = w_ih_e_t.reshape(E, 4 * Hp).astype(param_dtype)   # (E, 4Hp)

        w_hh_t = self.w_hh.T.reshape(H, 4, H)
        w_hh_t = jnp.pad(w_hh_t, ((0, Hp - H), (0, 0), (0, Hp - H)))
        self.w_hh_t = w_hh_t.reshape(Hp, 4 * Hp).astype(param_dtype)      # (Hp, 4Hp)

        bias = (self.b_ih + self.b_hh).reshape(4, H)                # b_ih + b_hh fused
        self.bias = jnp.pad(bias, ((0, 0), (0, Hp - H))).reshape(1, 4 * Hp)  # f32

        # attention=None -> context == 0: only the h half of fc_out.weight matters.
        w_fc_h_t = self.w_fc[:, :H].T                               # (H, O)
        self.w_fc_h_t = jnp.pad(w_fc_h_t, ((0, Hp - H), (0, Op - O))).astype(param_dtype)
        self.b_fc_pad = jnp.pad(self.b_fc, (0, Op - O)).reshape(1, -1)     # (1, Op) f32
        # TODO(synk): for very large vocab O, quantize w_fc_h_t to int8 (v5e/v6e) or
        # fp8 (v7x) with per-column scales to further halve the bandwidth-bound fc DMA.

    def __call__(self, input_token, hidden, encoder_outputs, src_lengths):
        """
        input_token     : (B,) int32
        hidden          : (h, c), each (num_layers=1, B, H)
        encoder_outputs : (B, src_len, H)   (unused: attention is None)
        src_lengths     : (B,)              (unused: attention is None)
        """
        h_in, c_in = hidden
        B = input_token.shape[0]
        H, Hp = self.hidden_size, self.h_pad
        Bp = _round_up(B, 8)                               # sublane-aligned batch

        # embedding lookup + dropout(eval) -> identity  [glue]
        embedded = jnp.take(self.embedding, input_token, axis=0)          # (B, E)
        embedded = jnp.pad(embedded, ((0, Bp - B), (0, 0)))
        h0 = jnp.pad(h_in[0].astype(jnp.float32), ((0, Bp - B), (0, Hp - H)))
        c0 = jnp.pad(c_in[0].astype(jnp.float32), ((0, Bp - B), (0, Hp - H)))

        # attention is None -> context = zeros(B, 1, H); instead of materializing the
        # zeros, the zero-context matmul terms are dropped inside the kernels.
        # TODO(synk): the external `attention` module is undefined in the source file;
        # if one is plugged in, pass its context plus the ctx halves of W_ih / W_fc
        # to the kernels in split-dot form instead of dropping those terms.
        if self.fused:
            pred_pad, h_new, c_new = decoder_step_fused(
                embedded, h0, c0, self.w_ih_e_t, self.w_hh_t, self.bias,
                self.w_fc_h_t, self.b_fc_pad)
        else:
            h_new, c_new, h_cast = lstm_cell_pallas(
                embedded, h0, c0, self.w_ih_e_t, self.w_hh_t, self.bias,
                self.param_dtype)
            pred_pad = fc_out_pallas(h_cast, self.w_fc_h_t, self.b_fc_pad, self.o_tile)

        prediction = pred_pad[:B, :self.output_dim]        # drop lane / batch padding
        h_out = h_new[:B, :H][None].astype(h_in.dtype)     # (1, B, H)
        c_out = c_new[:B, :H][None].astype(c_in.dtype)
        # TODO(synk): for autoregressive decoding, fuse the token loop into the kernel
        # (weights via constant-index specs DMA'd once, h/c carried in scratch), or at
        # minimum alias h0->h_new / c0->c_new via input_output_aliases so per-step
        # calls do not re-stream every weight matrix from HBM.
        return prediction, (h_out, c_out)


# -----------------------------------------------------------------------------
# Pure-JAX reference (f32), mirrors the PyTorch forward exactly
# -----------------------------------------------------------------------------
def _reference(dec, input_token, hidden):
    h0, c0 = hidden[0][0], hidden[1][0]
    H = dec.hidden_size
    emb = jnp.take(dec.embedding_w, input_token, axis=0)
    ctx = jnp.zeros_like(h0)
    x = jnp.concatenate([emb, ctx], axis=-1)
    gates = x @ dec.w_ih.T + dec.b_ih + h0 @ dec.w_hh.T + dec.b_hh
    i = jax.nn.sigmoid(gates[:, :H])
    f = jax.nn.sigmoid(gates[:, H:2 * H])
    g = jnp.tanh(gates[:, 2 * H:3 * H])
    o = jax.nn.sigmoid(gates[:, 3 * H:])
    c = f * c0 + i * g
    h = o * jnp.tanh(c)
    pred = jnp.concatenate([h, ctx], axis=-1) @ dec.w_fc.T + dec.b_fc
    return pred, h, c


if __name__ == "__main__":
    key = jax.random.PRNGKey(0)
    k_param, k_tok, k_h, k_c, k_enc = jax.random.split(key, 5)

    # Small shapes consistent with the module.
    B, E, H, O, SRC_LEN = 2, 32, 32, 200, 8

    input_token = jax.random.randint(k_tok, (B,), 0, O, dtype=jnp.int32)
    h0 = 0.1 * jax.random.normal(k_h, (1, B, H), jnp.float32)
    c0 = 0.1 * jax.random.normal(k_c, (1, B, H), jnp.float32)
    encoder_outputs = jax.random.normal(k_enc, (B, SRC_LEN, H), jnp.float32)
    src_lengths = jnp.full((B,), SRC_LEN, jnp.int32)

    # --- f32 weights, fused single-step path: tight check vs reference ---
    dec = DecoderWithAttentionPallas(O, E, H, k_param, param_dtype=jnp.float32)
    prediction, (h_new, c_new) = dec(input_token, (h0, c0),
                                     encoder_outputs, src_lengths)
    jax.block_until_ready((prediction, h_new, c_new))

    pred_ref, h_ref, c_ref = _reference(dec, input_token, (h0, c0))
    assert prediction.shape == (B, O)
    assert h_new.shape == (1, B, H) and c_new.shape == (1, B, H)
    np.testing.assert_allclose(np.asarray(prediction), np.asarray(pred_ref),
                               rtol=1e-5, atol=1e-5)
    np.testing.assert_allclose(np.asarray(h_new[0]), np.asarray(h_ref),
                               rtol=1e-5, atol=1e-5)
    np.testing.assert_allclose(np.asarray(c_new[0]), np.asarray(c_ref),
                               rtol=1e-5, atol=1e-5)

    # --- split path (LSTM-cell kernel + column-tiled fc, "parallel" grid), f32 ---
    dec_split = DecoderWithAttentionPallas(O, E, H, k_param, param_dtype=jnp.float32,
                                           o_tile=128, fuse_max_o=0)
    pred_s, (h_s, c_s) = dec_split(input_token, (h0, c0),
                                   encoder_outputs, src_lengths)
    jax.block_until_ready((pred_s, h_s, c_s))
    np.testing.assert_allclose(np.asarray(pred_s), np.asarray(pred_ref),
                               rtol=1e-5, atol=1e-5)
    np.testing.assert_allclose(np.asarray(h_s[0]), np.asarray(h_ref),
                               rtol=1e-5, atol=1e-5)
    np.testing.assert_allclose(np.asarray(c_s[0]), np.asarray(c_ref),
                               rtol=1e-5, atol=1e-5)

    # --- default bf16 weights (DMA / MXU-friendly on v5e/v6e/v7x); f32 gate math ---
    dec_bf16 = DecoderWithAttentionPallas(O, E, H, k_param)   # param_dtype=bf16 default
    pred_b, (h_b, c_b) = dec_bf16(input_token, (h0, c0),
                                  encoder_outputs, src_lengths)
    jax.block_until_ready((pred_b, h_b, c_b))
    np.testing.assert_allclose(np.asarray(pred_b), np.asarray(pred_ref),
                               rtol=3e-2, atol=3e-2)
    np.testing.assert_allclose(np.asarray(h_b[0]), np.asarray(h_ref),
                               rtol=3e-2, atol=3e-2)

    print("KERNEL_OK")
</pallas_src>

<mosaic_0001>
module attributes {stable_mosaic.version = 11 : i64} {
  func.func @_decoder_fused_kernel(%arg0: memref<8x32xf32, #tpu.memory_space<vmem>>, %arg1: memref<8x128xf32, #tpu.memory_space<vmem>>, %arg2: memref<8x128xf32, #tpu.memory_space<vmem>>, %arg3: memref<32x512xf32, #tpu.memory_space<vmem>>, %arg4: memref<128x512xf32, #tpu.memory_space<vmem>>, %arg5: memref<1x512xf32, #tpu.memory_space<vmem>>, %arg6: memref<128x256xf32, #tpu.memory_space<vmem>>, %arg7: memref<1x256xf32, #tpu.memory_space<vmem>>, %arg8: memref<8x256xf32, #tpu.memory_space<vmem>>, %arg9: memref<8x128xf32, #tpu.memory_space<vmem>>, %arg10: memref<8x128xf32, #tpu.memory_space<vmem>>) attributes {dimension_semantics = [], scalar_prefetch = 0 : i64, scratch_operands = 0 : i64, tpu.core_type = #tpu.core_type<tc>} {
    %c0 = arith.constant 0 : index
    %c0_0 = arith.constant 0 : index
    %0 = vector.load %arg0[%c0, %c0_0] : memref<8x32xf32, #tpu.memory_space<vmem>>, vector<8x32xf32>
    %c0_1 = arith.constant 0 : index
    %c0_2 = arith.constant 0 : index
    %1 = vector.load %arg1[%c0_1, %c0_2] : memref<8x128xf32, #tpu.memory_space<vmem>>, vector<8x128xf32>
    %c0_3 = arith.constant 0 : index
    %c0_4 = arith.constant 0 : index
    %2 = vector.load %arg2[%c0_3, %c0_4] : memref<8x128xf32, #tpu.memory_space<vmem>>, vector<8x128xf32>
    %c0_5 = arith.constant 0 : index
    %c0_6 = arith.constant 0 : index
    %3 = vector.load %arg3[%c0_5, %c0_6] : memref<32x512xf32, #tpu.memory_space<vmem>>, vector<32x512xf32>
    %c0_7 = arith.constant 0 : index
    %c0_8 = arith.constant 0 : index
    %4 = vector.load %arg4[%c0_7, %c0_8] : memref<128x512xf32, #tpu.memory_space<vmem>>, vector<128x512xf32>
    %c0_9 = arith.constant 0 : index
    %c0_10 = arith.constant 0 : index
    %5 = vector.load %arg5[%c0_9, %c0_10] : memref<1x512xf32, #tpu.memory_space<vmem>>, vector<1x512xf32>
    %cst = arith.constant dense<0.000000e+00> : vector<8x512xf32>
    %6 = tpu.matmul %0, %3, %cst {dimension_numbers = #tpu.dot_dimension_numbers<[1], [0], [0], [1], [0, 0, 1, 1], [], []>} : vector<8x32xf32>, vector<32x512xf32>, vector<8x512xf32> -> vector<8x512xf32>
    %cst_11 = arith.constant dense<0.000000e+00> : vector<8x512xf32>
    %7 = tpu.matmul %1, %4, %cst_11 {dimension_numbers = #tpu.dot_dimension_numbers<[1], [0], [0], [1], [0, 0, 1, 1], [], []>} : vector<8x128xf32>, vector<128x512xf32>, vector<8x512xf32> -> vector<8x512xf32>
    %8 = arith.addf %6, %7 : vector<8x512xf32>
    %9 = vector.broadcast %5 : vector<1x512xf32> to vector<8x512xf32>
    %10 = arith.addf %8, %9 : vector<8x512xf32>
    %11 = vector.extract_strided_slice %10 {offsets = [0, 0], sizes = [8, 128], strides = [1, 1]} : vector<8x512xf32> to vector<8x128xf32>
    %12 = arith.negf %11 : vector<8x128xf32>
    %13 = math.exp %12 : vector<8x128xf32>
    %cst_12 = arith.constant 1.000000e+00 : f32
    %14 = vector.broadcast %cst_12 : f32 to vector<8x128xf32>
    %15 = arith.addf %14, %13 : vector<8x128xf32>
    %16 = arith.divf %14, %15 : vector<8x128xf32>
    %17 = vector.extract_strided_slice %10 {offsets = [0, 128], sizes = [8, 128], strides = [1, 1]} : vector<8x512xf32> to vector<8x128xf32>
    %18 = arith.negf %17 : vector<8x128xf32>
    %19 = math.exp %18 : vector<8x128xf32>
    %cst_13 = arith.constant 1.000000e+00 : f32
    %20 = vector.broadcast %cst_13 : f32 to vector<8x128xf32>
    %21 = arith.addf %20, %19 : vector<8x128xf32>
    %22 = arith.divf %20, %21 : vector<8x128xf32>
    %23 = vector.extract_strided_slice %10 {offsets = [0, 256], sizes = [8, 128], strides = [1, 1]} : vector<8x512xf32> to vector<8x128xf32>
    %24 = math.tanh %23 : vector<8x128xf32>
    %25 = vector.extract_strided_slice %10 {offsets = [0, 384], sizes = [8, 128], strides = [1, 1]} : vector<8x512xf32> to vector<8x128xf32>
    %26 = arith.negf %25 : vector<8x128xf32>
    %27 = math.exp %26 : vector<8x128xf32>
    %cst_14 = arith.constant 1.000000e+00 : f32
    %28 = vector.broadcast %cst_14 : f32 to vector<8x128xf32>
    %29 = arith.addf %28, %27 : vector<8x128xf32>
    %30 = arith.divf %28, %29 : vector<8x128xf32>
    %31 = arith.mulf %22, %2 : vector<8x128xf32>
    %32 = arith.mulf %16, %24 : vector<8x128xf32>
    %33 = arith.addf %31, %32 : vector<8x128xf32>
    %34 = math.tanh %33 : vector<8x128xf32>
    %35 = arith.mulf %30, %34 : vector<8x128xf32>
    %c0_15 = arith.constant 0 : index
    %c0_16 = arith.constant 0 : index
    %36 = vector.load %arg9[%c0_15, %c0_16] : memref<8x128xf32, #tpu.memory_space<vmem>>, vector<8x128xf32>
    tpu.vector_store %arg9[%c0_15, %c0_16], %35 {strides = array<i32>} : memref<8x128xf32, #tpu.memory_space<vmem>>, vector<8x128xf32>,
    %c0_17 = arith.constant 0 : index
    %c0_18 = arith.constant 0 : index
    %37 = vector.load %arg10[%c0_17, %c0_18] : memref<8x128xf32, #tpu.memory_space<vmem>>, vector<8x128xf32>
    tpu.vector_store %arg10[%c0_17, %c0_18], %33 {strides = array<i32>} : memref<8x128xf32, #tpu.memory_space<vmem>>, vector<8x128xf32>,
    %c0_19 = arith.constant 0 : index
    %c0_20 = arith.constant 0 : index
    %38 = vector.load %arg6[%c0_19, %c0_20] : memref<128x256xf32, #tpu.memory_space<vmem>>, vector<128x256xf32>
    %cst_21 = arith.constant dense<0.000000e+00> : vector<8x256xf32>
    %39 = tpu.matmul %35, %38, %cst_21 {dimension_numbers = #tpu.dot_dimension_numbers<[1], [0], [0], [1], [0, 0, 1, 1], [], []>} : vector<8x128xf32>, vector<128x256xf32>, vector<8x256xf32> -> vector<8x256xf32>
    %c0_22 = arith.constant 0 : index
    %c0_23 = arith.constant 0 : index
    %40 = vector.load %arg7[%c0_22, %c0_23] : memref<1x256xf32, #tpu.memory_space<vmem>>, vector<1x256xf32>
    %41 = vector.broadcast %40 : vector<1x256xf32> to vector<8x256xf32>
    %42 = arith.addf %39, %41 : vector<8x256xf32>
    %c0_24 = arith.constant 0 : index
    %c0_25 = arith.constant 0 : index
    %43 = vector.load %arg8[%c0_24, %c0_25] : memref<8x256xf32, #tpu.memory_space<vmem>>, vector<8x256xf32>
    tpu.vector_store %arg8[%c0_24, %c0_25], %42 {strides = array<i32>} : memref<8x256xf32, #tpu.memory_space<vmem>>, vector<8x256xf32>,
    return
  }
}

</mosaic_0001>

<llo_original>
// kernel: tpu_custom_call.1
$region0: #{tpu_custom_call.1}
  #allocation0 [shape = 'u32[]', space=smem, size = 0x4, offset = 0x4, fixed_abs, tag = 'smem constant byte address 0x4 - core index']
  #allocation1 [shape = 'u32[144,128]{1,0:T(1,128)}', space=vmem, size = 0x12000, scoped, tag = 'internal scratch']
  %s0 = inlined_call_operand.hbm [shape: f32[8,32], index: 0, kind: input, shape index: {}]
  %s1 = inlined_call_operand.hbm [shape: f32[8,128], index: 1, kind: input, shape index: {}]
  %s2 = inlined_call_operand.hbm [shape: f32[8,128], index: 2, kind: input, shape index: {}]
  %s3 = inlined_call_operand.hbm [shape: f32[32,512], index: 3, kind: input, shape index: {}]
  %s4 = inlined_call_operand.hbm [shape: f32[128,512], index: 4, kind: input, shape index: {}]
  %s5 = inlined_call_operand.vmem [shape: f32[1,512], index: 5, kind: input, shape index: {}]
  %s6 = inlined_call_operand.hbm [shape: f32[128,256], index: 6, kind: input, shape index: {}]
  %s7 = inlined_call_operand.vmem [shape: f32[1,256], index: 7, kind: input, shape index: {}]
  %s8 = inlined_call_operand.hbm [shape: f32[8,256], index: 8, kind: output, shape index: {0}]
  %s9 = inlined_call_operand.hbm [shape: f32[8,128], index: 9, kind: output, shape index: {1}]
  %s10 = inlined_call_operand.hbm [shape: f32[8,128], index: 10, kind: output, shape index: {2}]
  %11 = xla_tuple %s8, %s9, %s10
  %s12 = sld [smem:[#allocation0]]
  $region82: #{tpu_custom_call.1} parent=0
    _
  %s14 = ssub.s32 1, %s12
  %s15 = scalar_select 0, %s14, %s12
  $region1: #{tpu_custom_call.1} parent=0
    #allocation2 [shape = 'u8[4096]{0}', space=vmem, size = 0x1000, scoped, tag = 'input window, operand 0, single buffered']
    #allocation3 [shape = 's32[1]{0}', space=sflag, size = 0x4, scoped, tag = 'scoped memory for tpu_custom_call.1']
    #allocation4 [shape = 's32[1]{0}', space=sflag, size = 0x4, scoped, tag = 'scoped memory for tpu_custom_call.1']
    #allocation5 [shape = 'u8[4096]{0}', space=vmem, size = 0x1000, scoped, tag = 'input window, operand 1, single buffered']
    #allocation6 [shape = 's32[1]{0}', space=sflag, size = 0x4, scoped, tag = 'scoped memory for tpu_custom_call.1']
    #allocation7 [shape = 'u8[4096]{0}', space=vmem, size = 0x1000, scoped, tag = 'input window, operand 2, single buffered']
    #allocation8 [shape = 'u8[65536]{0}', space=vmem, size = 0x10000, scoped, tag = 'input window, operand 3, single buffered']
    #allocation9 [shape = 's32[1]{0}', space=sflag, size = 0x4, scoped, tag = 'scoped memory for tpu_custom_call.1']
    #allocation10 [shape = 'u8[262144]{0}', space=vmem, size = 0x40000, scoped, tag = 'input window, operand 4, single buffered']
    #allocation11 [shape = 'u8[131072]{0}', space=vmem, size = 0x20000, scoped, tag = 'input window, operand 6, single buffered']
    #allocation12 [shape = 's32[1]{0}', space=sflag, size = 0x4, scoped, tag = 'scoped memory for tpu_custom_call.1']
    #allocation13 [shape = 'u8[8192]{0}', space=vmem, size = 0x2000, scoped, tag = 'output window, operand 0, single buffered']
    #allocation14 [shape = 'u8[4096]{0}', space=vmem, size = 0x1000, scoped, tag = 'output window, operand 1, single buffered']
    #allocation15 [shape = 's32[1]{0}', space=sflag, size = 0x4, scoped, tag = 'scoped memory for tpu_custom_call.1']
    #allocation16 [shape = 'u8[4096]{0}', space=vmem, size = 0x1000, scoped, tag = 'output window, operand 2, single buffered']
    %16 = vsyncpa [#allocation3], 0
    %17 = vsyncpa [#allocation6], 0
    %18 = vsyncpa [#allocation9], 0
    %19 = vsyncpa [#allocation12], 0
    %20 = vsyncpa [#allocation4], 0
    %21 = vsyncpa [#allocation15], 0
    // Predicated region
    $region2: #{tpu_custom_call.1} parent=1 // pred_check
      _
    $region3: #{tpu_custom_call.1} parent=1 // pred_check_branch
      %23 = sbr.rel (0) target = $region5
    $region4: #{tpu_custom_call.1} parent=1 // pred_region
      %s25 = ssub.s32 128, 128
      %26 = vsyncadd [#allocation3], %s25
      %s28 = sshll.u32 [#allocation2], 4
      %s29 = int_to_ptr.vmem [resolvable:$true] %s28
      %31 = dma.hbm_to_vmem [thread:$0]  %s0, 128, %s29, [#allocation3]
    $region5: #{tpu_custom_call.1} parent=1 // pred_fallthru
      _
    // Predicated region
    $region6: #{tpu_custom_call.1} parent=1 // pred_check
      _
    $region7: #{tpu_custom_call.1} parent=1 // pred_check_branch
      %33 = sbr.rel (0) target = $region9
    $region8: #{tpu_custom_call.1} parent=1 // pred_region
      %s35 = ssub.s32 128, 128
      %36 = vsyncadd [#allocation6], %s35
      %s38 = sshll.u32 [#allocation5], 4
      %s39 = int_to_ptr.vmem [resolvable:$true] %s38
      %41 = dma.hbm_to_vmem [thread:$0]  %s1, 128, %s39, [#allocation6]
    $region9: #{tpu_custom_call.1} parent=1 // pred_fallthru
      _
    // Predicated region
    $region10: #{tpu_custom_call.1} parent=1 // pred_check
      _
    $region11: #{tpu_custom_call.1} parent=1 // pred_check_branch
      %43 = sbr.rel (0) target = $region13
    $region12: #{tpu_custom_call.1} parent=1 // pred_region
      %s45 = ssub.s32 128, 128
      %46 = vsyncadd [#allocation6], %s45
      %s48 = sshll.u32 [#allocation7], 4
      %s49 = int_to_ptr.vmem [resolvable:$true] %s48
      %51 = dma.hbm_to_vmem [thread:$0]  %s2, 128, %s49, [#allocation6]
    $region13: #{tpu_custom_call.1} parent=1 // pred_fallthru
      _
    // Predicated region
    $region14: #{tpu_custom_call.1} parent=1 // pred_check
      _
    $region15: #{tpu_custom_call.1} parent=1 // pred_check_branch
      %53 = sbr.rel (0) target = $region17
    $region16: #{tpu_custom_call.1} parent=1 // pred_region
      %s55 = ssub.s32 2048, 2048
      %56 = vsyncadd [#allocation9], %s55
      %s57 = sshll.u32 [#allocation8], 4
      %s58 = int_to_ptr.vmem [resolvable:$true] %s57
      %63 = dma.hbm_to_vmem [thread:$0]  %s3, 2048, %s58, [#allocation9], 512, 512, 32
    $region17: #{tpu_custom_call.1} parent=1 // pred_fallthru
      _
    // Predicated region
    $region18: #{tpu_custom_call.1} parent=1 // pred_check
      _
    $region19: #{tpu_custom_call.1} parent=1 // pred_check_branch
      %65 = sbr.rel (0) target = $region21
    $region20: #{tpu_custom_call.1} parent=1 // pred_region
      %s67 = ssub.s32 8192, 8192
      %68 = vsyncadd [#allocation9], %s67
      %s69 = sshll.u32 [#allocation10], 4
      %s70 = int_to_ptr.vmem [resolvable:$true] %s69
      %75 = dma.hbm_to_vmem [thread:$0]  %s4, 8192, %s70, [#allocation9], 512, 512, 32
    $region21: #{tpu_custom_call.1} parent=1 // pred_fallthru
      _
    // Predicated region
    $region22: #{tpu_custom_call.1} parent=1 // pred_check
      _
    $region23: #{tpu_custom_call.1} parent=1 // pred_check_branch
      %77 = sbr.rel (0) target = $region25
    $region24: #{tpu_custom_call.1} parent=1 // pred_region
      _
    $region25: #{tpu_custom_call.1} parent=1 // pred_fallthru
      _
    // Predicated region
    $region26: #{tpu_custom_call.1} parent=1 // pred_check
      _
    $region27: #{tpu_custom_call.1} parent=1 // pred_check_branch
      %79 = sbr.rel (0) target = $region29
    $region28: #{tpu_custom_call.1} parent=1 // pred_region
      %s81 = ssub.s32 4096, 4096
      %82 = vsyncadd [#allocation12], %s81
      %s83 = sshll.u32 [#allocation11], 4
      %s84 = int_to_ptr.vmem [resolvable:$true] %s83
      %89 = dma.hbm_to_vmem [thread:$0]  %s6, 4096, %s84, [#allocation12], 256, 256, 16
    $region29: #{tpu_custom_call.1} parent=1 // pred_fallthru
      _
    // Predicated region
    $region30: #{tpu_custom_call.1} parent=1 // pred_check
      _
    $region31: #{tpu_custom_call.1} parent=1 // pred_check_branch
      %91 = sbr.rel (0) target = $region33
    $region32: #{tpu_custom_call.1} parent=1 // pred_region
      _
    $region33: #{tpu_custom_call.1} parent=1 // pred_fallthru
      _
    // Predicated region
    $region34: #{tpu_custom_call.1} parent=1 // pred_check
      _
    $region35: #{tpu_custom_call.1} parent=1 // pred_check_branch
      %93 = sbr.rel (0) target = $region37
    $region36: #{tpu_custom_call.1} parent=1 // pred_region
      %94 = dma.done [#allocation3], 128
    $region37: #{tpu_custom_call.1} parent=1 // pred_fallthru
      _
    // Predicated region
    $region38: #{tpu_custom_call.1} parent=1 // pred_check
      _
    $region39: #{tpu_custom_call.1} parent=1 // pred_check_branch
      %96 = sbr.rel (0) target = $region41
    $region40: #{tpu_custom_call.1} parent=1 // pred_region
      %97 = dma.done [#allocation6], 128
    $region41: #{tpu_custom_call.1} parent=1 // pred_fallthru
      _
    // Predicated region
    $region42: #{tpu_custom_call.1} parent=1 // pred_check
      _
    $region43: #{tpu_custom_call.1} parent=1 // pred_check_branch
      %99 = sbr.rel (0) target = $region45
    $region44: #{tpu_custom_call.1} parent=1 // pred_region
      %100 = dma.done [#allocation6], 128
    $region45: #{tpu_custom_call.1} parent=1 // pred_fallthru
      _
    // Predicated region
    $region46: #{tpu_custom_call.1} parent=1 // pred_check
      _
    $region47: #{tpu_custom_call.1} parent=1 // pred_check_branch
      %102 = sbr.rel (0) target = $region49
    $region48: #{tpu_custom_call.1} parent=1 // pred_region
      %103 = dma.done [#allocation9], 2048
    $region49: #{tpu_custom_call.1} parent=1 // pred_fallthru
      _
    // Predicated region
    $region50: #{tpu_custom_call.1} parent=1 // pred_check
      _
    $region51: #{tpu_custom_call.1} parent=1 // pred_check_branch
      %105 = sbr.rel (0) target = $region53
    $region52: #{tpu_custom_call.1} parent=1 // pred_region
      %106 = dma.done [#allocation9], 8192
    $region53: #{tpu_custom_call.1} parent=1 // pred_fallthru
      _
    // Predicated region
    $region54: #{tpu_custom_call.1} parent=1 // pred_check
      _
    $region55: #{tpu_custom_call.1} parent=1 // pred_check_branch
      %108 = sbr.rel (0) target = $region57
    $region56: #{tpu_custom_call.1} parent=1 // pred_region
      %109 = dma.done [#allocation12], 4096
    $region57: #{tpu_custom_call.1} parent=1 // pred_fallthru
      _
    %v110 = vld [vmem:[#allocation2] sm:$0xff]
    %v111 = vld [vmem:[#allocation5] sm:$0xff]
    %v112 = vld [vmem:[#allocation7] sm:$0xff]
    %v113 = vld [vmem:[#allocation8] sm:$0xff]
    %v114 = vld [vmem:[#allocation8 + $0x8] sm:$0xff]
    %v115 = vld [vmem:[#allocation8 + $0x10] sm:$0xff]
    %v116 = vld [vmem:[#allocation8 + $0x18] sm:$0xff]
    %v117 = vld [vmem:[#allocation8 + $0x20] sm:$0xff]
    %v118 = vld [vmem:[#allocation8 + $0x28] sm:$0xff]
    %v119 = vld [vmem:[#allocation8 + $0x30] sm:$0xff]
    %v120 = vld [vmem:[#allocation8 + $0x38] sm:$0xff]
    %v121 = vld [vmem:[#allocation8 + $0x40] sm:$0xff]
    %v122 = vld [vmem:[#allocation8 + $0x48] sm:$0xff]
    %v123 = vld [vmem:[#allocation8 + $0x50] sm:$0xff]
    %v124 = vld [vmem:[#allocation8 + $0x58] sm:$0xff]
    %v125 = vld [vmem:[#allocation8 + $0x60] sm:$0xff]
    %v126 = vld [vmem:[#allocation8 + $0x68] sm:$0xff]
    %v127 = vld [vmem:[#allocation8 + $0x70] sm:$0xff]
    %v128 = vld [vmem:[#allocation8 + $0x78] sm:$0xff]
    %v129 = vld [vmem:[#allocation10] sm:$0xff]
    %v130 = vld [vmem:[#allocation10 + $0x8] sm:$0xff]
    %v131 = vld [vmem:[#allocation10 + $0x10] sm:$0xff]
    %v132 = vld [vmem:[#allocation10 + $0x18] sm:$0xff]
    %v133 = vld [vmem:[#allocation10 + $0x20] sm:$0xff]
    %v134 = vld [vmem:[#allocation10 + $0x28] sm:$0xff]
    %v135 = vld [vmem:[#allocation10 + $0x30] sm:$0xff]
    %v136 = vld [vmem:[#allocation10 + $0x38] sm:$0xff]
    %v137 = vld [vmem:[#allocation10 + $0x40] sm:$0xff]
    %v138 = vld [vmem:[#allocation10 + $0x48] sm:$0xff]
    %v139 = vld [vmem:[#allocation10 + $0x50] sm:$0xff]
    %v140 = vld [vmem:[#allocation10 + $0x58] sm:$0xff]
    %v141 = vld [vmem:[#allocation10 + $0x60] sm:$0xff]
    %v142 = vld [vmem:[#allocation10 + $0x68] sm:$0xff]
    %v143 = vld [vmem:[#allocation10 + $0x70] sm:$0xff]
    %v144 = vld [vmem:[#allocation10 + $0x78] sm:$0xff]
    %v145 = vld [vmem:[#allocation10 + $0x80] sm:$0xff]
    %v146 = vld [vmem:[#allocation10 + $0x88] sm:$0xff]
    %v147 = vld [vmem:[#allocation10 + $0x90] sm:$0xff]
    %v148 = vld [vmem:[#allocation10 + $0x98] sm:$0xff]
    %v149 = vld [vmem:[#allocation10 + $0xa0] sm:$0xff]
    %v150 = vld [vmem:[#allocation10 + $0xa8] sm:$0xff]
    %v151 = vld [vmem:[#allocation10 + $0xb0] sm:$0xff]
    %v152 = vld [vmem:[#allocation10 + $0xb8] sm:$0xff]
    %v153 = vld [vmem:[#allocation10 + $0xc0] sm:$0xff]
    %v154 = vld [vmem:[#allocation10 + $0xc8] sm:$0xff]
    %v155 = vld [vmem:[#allocation10 + $0xd0] sm:$0xff]
    %v156 = vld [vmem:[#allocation10 + $0xd8] sm:$0xff]
    %v157 = vld [vmem:[#allocation10 + $0xe0] sm:$0xff]
    %v158 = vld [vmem:[#allocation10 + $0xe8] sm:$0xff]
    %v159 = vld [vmem:[#allocation10 + $0xf0] sm:$0xff]
    %v160 = vld [vmem:[#allocation10 + $0xf8] sm:$0xff]
    %v161 = vld [vmem:[#allocation10 + $0x100] sm:$0xff]
    %v162 = vld [vmem:[#allocation10 + $0x108] sm:$0xff]
    %v163 = vld [vmem:[#allocation10 + $0x110] sm:$0xff]
    %v164 = vld [vmem:[#allocation10 + $0x118] sm:$0xff]
    %v165 = vld [vmem:[#allocation10 + $0x120] sm:$0xff]
    %v166 = vld [vmem:[#allocation10 + $0x128] sm:$0xff]
    %v167 = vld [vmem:[#allocation10 + $0x130] sm:$0xff]
    %v168 = vld [vmem:[#allocation10 + $0x138] sm:$0xff]
    %v169 = vld [vmem:[#allocation10 + $0x140] sm:$0xff]
    %v170 = vld [vmem:[#allocation10 + $0x148] sm:$0xff]
    %v171 = vld [vmem:[#allocation10 + $0x150] sm:$0xff]
    %v172 = vld [vmem:[#allocation10 + $0x158] sm:$0xff]
    %v173 = vld [vmem:[#allocation10 + $0x160] sm:$0xff]
    %v174 = vld [vmem:[#allocation10 + $0x168] sm:$0xff]
    %v175 = vld [vmem:[#allocation10 + $0x170] sm:$0xff]
    %v176 = vld [vmem:[#allocation10 + $0x178] sm:$0xff]
    %v177 = vld [vmem:[#allocation10 + $0x180] sm:$0xff]
    %v178 = vld [vmem:[#allocation10 + $0x188] sm:$0xff]
    %v179 = vld [vmem:[#allocation10 + $0x190] sm:$0xff]
    %v180 = vld [vmem:[#allocation10 + $0x198] sm:$0xff]
    %v181 = vld [vmem:[#allocation10 + $0x1a0] sm:$0xff]
    %v182 = vld [vmem:[#allocation10 + $0x1a8] sm:$0xff]
    %v183 = vld [vmem:[#allocation10 + $0x1b0] sm:$0xff]
    %v184 = vld [vmem:[#allocation10 + $0x1b8] sm:$0xff]
    %v185 = vld [vmem:[#allocation10 + $0x1c0] sm:$0xff]
    %v186 = vld [vmem:[#allocation10 + $0x1c8] sm:$0xff]
    %v187 = vld [vmem:[#allocation10 + $0x1d0] sm:$0xff]
    %v188 = vld [vmem:[#allocation10 + $0x1d8] sm:$0xff]
    %v189 = vld [vmem:[#allocation10 + $0x1e0] sm:$0xff]
    %v190 = vld [vmem:[#allocation10 + $0x1e8] sm:$0xff]
    %v191 = vld [vmem:[#allocation10 + $0x1f0] sm:$0xff]
    %v192 = vld [vmem:[#allocation10 + $0x1f8] sm:$0xff]
    %v193 = vld [vmem:[%s5] sm:$0xf]
    %194 = vmatprep.subr.mxu0 %v130
    %195 = vmatpush1.msra.mxu0 %v129
    %196 = vmatprep.subr.mxu0 %v134
    %197 = vmatpush1.msra.mxu0 %v133
    %198 = vmatprep.subr.mxu0 %v138
    %199 = vmatpush1.msra.mxu0 %v137
    %200 = vmatprep.subr.mxu0 %v142
    %201 = vmatpush1.msra.mxu0 %v141
    %202 = vmatprep.subr.mxu0 %v146
    %203 = vmatpush1.msra.mxu0 %v145
    %204 = vmatprep.subr.mxu0 %v150
    %205 = vmatpush1.msra.mxu0 %v149
    %206 = vmatprep.subr.mxu0 %v154
    %207 = vmatpush1.msra.mxu0 %v153
    %208 = vmatprep.subr.mxu0 %v158
    %209 = vmatpush1.msra.mxu0 %v157
    %210 = vmatprep.subr.mxu0 %v162
    %211 = vmatpush1.msra.mxu0 %v161
    %212 = vmatprep.subr.mxu0 %v166
    %213 = vmatpush1.msra.mxu0 %v165
    %214 = vmatprep.subr.mxu0 %v170
    %215 = vmatpush1.msra.mxu0 %v169
    %216 = vmatprep.subr.mxu0 %v174
    %217 = vmatpush1.msra.mxu0 %v173
    %218 = vmatprep.subr.mxu0 %v178
    %219 = vmatpush1.msra.mxu0 %v177
    %220 = vmatprep.subr.mxu0 %v182
    %221 = vmatpush1.msra.mxu0 %v181
    %222 = vmatprep.subr.mxu0 %v186
    %223 = vmatpush1.msra.mxu0 %v185
    %224 = vmatprep.subr.mxu0 %v190
    %225 = vmatpush1.msra.mxu0 %v189
    %226 = vmatprep.subr.mxu0 0.0
    %227 = vmatpush1.msra.mxu0 0.0
    %228 = vmatprep.subr.mxu0 0.0
    %229 = vmatpush1.msra.mxu0 0.0
    %230 = vmatprep.subr.mxu0 0.0
    %231 = vmatpush1.msra.mxu0 0.0
    %232 = vmatprep.subr.mxu0 0.0
    %233 = vmatpush1.msra.mxu0 0.0
    %234 = vmatprep.subr.mxu0 0.0
    %235 = vmatpush1.msra.mxu0 0.0
    %236 = vmatprep.subr.mxu0 0.0
    %237 = vmatpush1.msra.mxu0 0.0
    %238 = vmatprep.subr.mxu0 0.0
    %239 = vmatpush1.msra.mxu0 0.0
    %240 = vmatprep.subr.mxu0 0.0
    %241 = vmatpush1.msra.mxu0 0.0
    %242 = vmatprep.subr.mxu0 0.0
    %243 = vmatpush1.msra.mxu0 0.0
    %244 = vmatprep.subr.mxu0 0.0
    %245 = vmatpush1.msra.mxu0 0.0
    %246 = vmatprep.subr.mxu0 0.0
    %247 = vmatpush1.msra.mxu0 0.0
    %248 = vmatprep.subr.mxu0 0.0
    %249 = vmatpush1.msra.mxu0 0.0
    %250 = vmatprep.subr.mxu0 0.0
    %251 = vmatpush1.msra.mxu0 0.0
    %252 = vmatprep.subr.mxu0 0.0
    %253 = vmatpush1.msra.mxu0 0.0
    %254 = vmatprep.subr.mxu0 0.0
    %255 = vmatpush1.msra.mxu0 0.0
    %256 = vmatprep.subr.mxu0 0.0
    %257 = vmatpush1.msra.mxu0 0.0
    %258 = vmatprep.mubr.f32.mxu0 0.0
    %259 = vmatmul.mubr.f32.gmra.mrb[0].mxu0 %v111
    %v260 = vpop.f32.mrb[0].mxu0
    %v261 = vadd.f32 0.0, %v260
    %v262 = vpop.f32.mrb[0].mxu0
    %v263 = vadd.f32 0.0, %v262
    %264 = vdwg.mxu0
    %265 = vmatprep.subr.mxu0 %v132
    %266 = vmatpush1.msra.mxu0 %v131
    %267 = vmatprep.subr.mxu0 %v136
    %268 = vmatpush1.msra.mxu0 %v135
    %269 = vmatprep.subr.mxu0 %v140
    %270 = vmatpush1.msra.mxu0 %v139
    %271 = vmatprep.subr.mxu0 %v144
    %272 = vmatpush1.msra.mxu0 %v143
    %273 = vmatprep.subr.mxu0 %v148
    %274 = vmatpush1.msra.mxu0 %v147
    %275 = vmatprep.subr.mxu0 %v152
    %276 = vmatpush1.msra.mxu0 %v151
    %277 = vmatprep.subr.mxu0 %v156
    %278 = vmatpush1.msra.mxu0 %v155
    %279 = vmatprep.subr.mxu0 %v160
    %280 = vmatpush1.msra.mxu0 %v159
    %281 = vmatprep.subr.mxu0 %v164
    %282 = vmatpush1.msra.mxu0 %v163
    %283 = vmatprep.subr.mxu0 %v168
    %284 = vmatpush1.msra.mxu0 %v167
    %285 = vmatprep.subr.mxu0 %v172
    %286 = vmatpush1.msra.mxu0 %v171
    %287 = vmatprep.subr.mxu0 %v176
    %288 = vmatpush1.msra.mxu0 %v175
    %289 = vmatprep.subr.mxu0 %v180
    %290 = vmatpush1.msra.mxu0 %v179
    %291 = vmatprep.subr.mxu0 %v184
    %292 = vmatpush1.msra.mxu0 %v183
    %293 = vmatprep.subr.mxu0 %v188
    %294 = vmatpush1.msra.mxu0 %v187
    %295 = vmatprep.subr.mxu0 %v192
    %296 = vmatpush1.msra.mxu0 %v191
    %297 = vmatprep.subr.mxu0 0.0
    %298 = vmatpush1.msra.mxu0 0.0
    %299 = vmatprep.subr.mxu0 0.0
    %300 = vmatpush1.msra.mxu0 0.0
    %301 = vmatprep.subr.mxu0 0.0
    %302 = vmatpush1.msra.mxu0 0.0
    %303 = vmatprep.subr.mxu0 0.0
    %304 = vmatpush1.msra.mxu0 0.0
    %305 = vmatprep.subr.mxu0 0.0
    %306 = vmatpush1.msra.mxu0 0.0
    %307 = vmatprep.subr.mxu0 0.0
    %308 = vmatpush1.msra.mxu0 0.0
    %309 = vmatprep.subr.mxu0 0.0
    %310 = vmatpush1.msra.mxu0 0.0
    %311 = vmatprep.subr.mxu0 0.0
    %312 = vmatpush1.msra.mxu0 0.0
    %313 = vmatprep.subr.mxu0 0.0
    %314 = vmatpush1.msra.mxu0 0.0
    %315 = vmatprep.subr.mxu0 0.0
    %316 = vmatpush1.msra.mxu0 0.0
    %317 = vmatprep.subr.mxu0 0.0
    %318 = vmatpush1.msra.mxu0 0.0
    %319 = vmatprep.subr.mxu0 0.0
    %320 = vmatpush1.msra.mxu0 0.0
    %321 = vmatprep.subr.mxu0 0.0
    %322 = vmatpush1.msra.mxu0 0.0
    %323 = vmatprep.subr.mxu0 0.0
    %324 = vmatpush1.msra.mxu0 0.0
    %325 = vmatprep.subr.mxu0 0.0
    %326 = vmatpush1.msra.mxu0 0.0
    %327 = vmatprep.subr.mxu0 0.0
    %328 = vmatpush1.msra.mxu0 0.0
    %329 = vmatprep.mubr.f32.mxu0 0.0
    %330 = vmatmul.mubr.f32.gmra.mrb[0].mxu0 %v111
    %v331 = vpop.f32.mrb[0].mxu0
    %v332 = vadd.f32 0.0, %v331
    %v333 = vpop.f32.mrb[0].mxu0
    %v334 = vadd.f32 0.0, %v333
    %335 = vdwg.mxu0
    %vm336 = vcmask 261120
    %v338 = vsel %vm336, %v110, 0
    %340 = vmatprep.subr.mxu0 %v114
    %341 = vmatpush1.msra.mxu0 %v113
    %342 = vmatprep.subr.mxu0 %v118
    %343 = vmatpush1.msra.mxu0 %v117
    %344 = vmatprep.subr.mxu0 %v122
    %345 = vmatpush1.msra.mxu0 %v121
    %346 = vmatprep.subr.mxu0 %v126
    %347 = vmatpush1.msra.mxu0 %v125
    %348 = vmatprep.subr.mxu0 0.0
    %349 = vmatpush1.msra.mxu0 0.0
    %350 = vmatprep.subr.mxu0 0.0
    %351 = vmatpush1.msra.mxu0 0.0
    %352 = vmatprep.subr.mxu0 0.0
    %353 = vmatpush1.msra.mxu0 0.0
    %354 = vmatprep.subr.mxu0 0.0
    %355 = vmatpush1.msra.mxu0 0.0
    %356 = vmatprep.subr.mxu0 0.0
    %357 = vmatpush1.msra.mxu0 0.0
    %358 = vmatprep.subr.mxu0 0.0
    %359 = vmatpush1.msra.mxu0 0.0
    %360 = vmatprep.subr.mxu0 0.0
    %361 = vmatpush1.msra.mxu0 0.0
    %362 = vmatprep.subr.mxu0 0.0
    %363 = vmatpush1.msra.mxu0 0.0
    %364 = vmatprep.subr.mxu0 0.0
    %365 = vmatpush1.msra.mxu0 0.0
    %366 = vmatprep.subr.mxu0 0.0
    %367 = vmatpush1.msra.mxu0 0.0
    %368 = vmatprep.subr.mxu0 0.0
    %369 = vmatpush1.msra.mxu0 0.0
    %370 = vmatprep.subr.mxu0 0.0
    %371 = vmatpush1.msra.mxu0 0.0
    %372 = vmatprep.subr.mxu0 0.0
    %373 = vmatpush1.msra.mxu0 0.0
    %374 = vmatprep.subr.mxu0 0.0
    %375 = vmatpush1.msra.mxu0 0.0
    %376 = vmatprep.subr.mxu0 0.0
    %377 = vmatpush1.msra.mxu0 0.0
    %378 = vmatprep.subr.mxu0 0.0
    %379 = vmatpush1.msra.mxu0 0.0
    %380 = vmatprep.subr.mxu0 0.0
    %381 = vmatpush1.msra.mxu0 0.0
    %382 = vmatprep.subr.mxu0 0.0
    %383 = vmatpush1.msra.mxu0 0.0
    %384 = vmatprep.subr.mxu0 0.0
    %385 = vmatpush1.msra.mxu0 0.0
    %386 = vmatprep.subr.mxu0 0.0
    %387 = vmatpush1.msra.mxu0 0.0
    %388 = vmatprep.subr.mxu0 0.0
    %389 = vmatpush1.msra.mxu0 0.0
    %390 = vmatprep.subr.mxu0 0.0
    %391 = vmatpush1.msra.mxu0 0.0
    %392 = vmatprep.subr.mxu0 0.0
    %393 = vmatpush1.msra.mxu0 0.0
    %394 = vmatprep.subr.mxu0 0.0
    %395 = vmatpush1.msra.mxu0 0.0
    %396 = vmatprep.subr.mxu0 0.0
    %397 = vmatpush1.msra.mxu0 0.0
    %398 = vmatprep.subr.mxu0 0.0
    %399 = vmatpush1.msra.mxu0 0.0
    %400 = vmatprep.subr.mxu0 0.0
    %401 = vmatpush1.msra.mxu0 0.0
    %402 = vmatprep.subr.mxu0 0.0
    %403 = vmatpush1.msra.mxu0 0.0
    %404 = vmatprep.mubr.f32.mxu0 0.0
    %405 = vmatmul.mubr.f32.gmra.mrb[0].mxu0 %v338
    %v406 = vpop.f32.mrb[0].mxu0
    %v407 = vadd.f32 %v261, %v406
    %v408 = vpop.f32.mrb[0].mxu0
    %v409 = vadd.f32 %v263, %v408
    %410 = vdwg.mxu0
    %411 = vmatprep.subr.mxu0 %v116
    %412 = vmatpush1.msra.mxu0 %v115
    %413 = vmatprep.subr.mxu0 %v120
    %414 = vmatpush1.msra.mxu0 %v119
    %415 = vmatprep.subr.mxu0 %v124
    %416 = vmatpush1.msra.mxu0 %v123
    %417 = vmatprep.subr.mxu0 %v128
    %418 = vmatpush1.msra.mxu0 %v127
    %419 = vmatprep.subr.mxu0 0.0
    %420 = vmatpush1.msra.mxu0 0.0
    %421 = vmatprep.subr.mxu0 0.0
    %422 = vmatpush1.msra.mxu0 0.0
    %423 = vmatprep.subr.mxu0 0.0
    %424 = vmatpush1.msra.mxu0 0.0
    %425 = vmatprep.subr.mxu0 0.0
    %426 = vmatpush1.msra.mxu0 0.0
    %427 = vmatprep.subr.mxu0 0.0
    %428 = vmatpush1.msra.mxu0 0.0
    %429 = vmatprep.subr.mxu0 0.0
    %430 = vmatpush1.msra.mxu0 0.0
    %431 = vmatprep.subr.mxu0 0.0
    %432 = vmatpush1.msra.mxu0 0.0
    %433 = vmatprep.subr.mxu0 0.0
    %434 = vmatpush1.msra.mxu0 0.0
    %435 = vmatprep.subr.mxu0 0.0
    %436 = vmatpush1.msra.mxu0 0.0
    %437 = vmatprep.subr.mxu0 0.0
    %438 = vmatpush1.msra.mxu0 0.0
    %439 = vmatprep.subr.mxu0 0.0
    %440 = vmatpush1.msra.mxu0 0.0
    %441 = vmatprep.subr.mxu0 0.0
    %442 = vmatpush1.msra.mxu0 0.0
    %443 = vmatprep.subr.mxu0 0.0
    %444 = vmatpush1.msra.mxu0 0.0
    %445 = vmatprep.subr.mxu0 0.0
    %446 = vmatpush1.msra.mxu0 0.0
    %447 = vmatprep.subr.mxu0 0.0
    %448 = vmatpush1.msra.mxu0 0.0
    %449 = vmatprep.subr.mxu0 0.0
    %450 = vmatpush1.msra.mxu0 0.0
    %451 = vmatprep.subr.mxu0 0.0
    %452 = vmatpush1.msra.mxu0 0.0
    %453 = vmatprep.subr.mxu0 0.0
    %454 = vmatpush1.msra.mxu0 0.0
    %455 = vmatprep.subr.mxu0 0.0
    %456 = vmatpush1.msra.mxu0 0.0
    %457 = vmatprep.subr.mxu0 0.0
    %458 = vmatpush1.msra.mxu0 0.0
    %459 = vmatprep.subr.mxu0 0.0
    %460 = vmatpush1.msra.mxu0 0.0
    %461 = vmatprep.subr.mxu0 0.0
    %462 = vmatpush1.msra.mxu0 0.0
    %463 = vmatprep.subr.mxu0 0.0
    %464 = vmatpush1.msra.mxu0 0.0
    %465 = vmatprep.subr.mxu0 0.0
    %466 = vmatpush1.msra.mxu0 0.0
    %467 = vmatprep.subr.mxu0 0.0
    %468 = vmatpush1.msra.mxu0 0.0
    %469 = vmatprep.subr.mxu0 0.0
    %470 = vmatpush1.msra.mxu0 0.0
    %471 = vmatprep.subr.mxu0 0.0
    %472 = vmatpush1.msra.mxu0 0.0
    %473 = vmatprep.subr.mxu0 0.0
    %474 = vmatpush1.msra.mxu0 0.0
    %475 = vmatprep.mubr.f32.mxu0 0.0
    %476 = vmatmul.mubr.f32.gmra.mrb[0].mxu0 %v338
    %v477 = vpop.f32.mrb[0].mxu0
    %v478 = vadd.f32 %v332, %v477
    %v479 = vpop.f32.mrb[0].mxu0
    %v480 = vadd.f32 %v334, %v479
    %481 = vdwg.mxu0
    %v483 = vlaneseq
    %v484 = vshrl.u32 %v483, 7
    %v485 = vsub.s32 0, %v484
    %v486 = vrot.slane %v193, %v485
    %v487 = vlaneseq
    %v488 = vshrl.u32 %v487, 7
    %v489 = vsub.s32 1, %v488
    %v490 = vrot.slane %v193, %v489
    %v491 = vlaneseq
    %v492 = vshrl.u32 %v491, 7
    %v493 = vsub.s32 2, %v492
    %v494 = vrot.slane %v193, %v493
    %v495 = vlaneseq
    %v496 = vshrl.u32 %v495, 7
    %v497 = vsub.s32 3, %v496
    %v498 = vrot.slane %v193, %v497
    %v503 = vadd.f32 %v407, %v486
    %v504 = vadd.f32 %v409, %v490
    %v505 = vadd.f32 %v478, %v494
    %v506 = vadd.f32 %v480, %v498
    %v507 = vxor.u32 %v503, 2147483648
    %v508 = vmul.f32 %v507, 1.442695
    %v509 = vpow.pop %v508
    %v510 = vadd.f32 %v509, 1.0
    %v511 = vrcp.pop %v510
    %v512 = vmul.f32 1.0, %v511
    %v513 = vxor.u32 %v504, 2147483648
    %v514 = vmul.f32 %v513, 1.442695
    %v515 = vpow.pop %v514
    %v516 = vadd.f32 %v515, 1.0
    %v517 = vrcp.pop %v516
    %v518 = vmul.f32 1.0, %v517
    %v519 = vtanh.pop %v505
    %v520 = vxor.u32 %v506, 2147483648
    %v521 = vmul.f32 %v520, 1.442695
    %v522 = vpow.pop %v521
    %v523 = vadd.f32 %v522, 1.0
    %v524 = vrcp.pop %v523
    %v525 = vmul.f32 1.0, %v524
    %v526 = vmul.f32 %v518, %v112
    %v527 = vmul.f32 %v512, %v519
    %v528 = vadd.f32 %v526, %v527
    %v529 = vtanh.pop %v528
    %v530 = vmul.f32 %v525, %v529
    %531 = vst [vmem:[#allocation14] sm:$0xff] %v530
    %532 = vst [vmem:[#allocation16] sm:$0xff] %v528
    %v533 = vld [vmem:[#allocation11] sm:$0xff]
    %v534 = vld [vmem:[#allocation11 + $0x8] sm:$0xff]
    %v535 = vld [vmem:[#allocation11 + $0x10] sm:$0xff]
    %v536 = vld [vmem:[#allocation11 + $0x18] sm:$0xff]
    %v537 = vld [vmem:[#allocation11 + $0x20] sm:$0xff]
    %v538 = vld [vmem:[#allocation11 + $0x28] sm:$0xff]
    %v539 = vld [vmem:[#allocation11 + $0x30] sm:$0xff]
    %v540 = vld [vmem:[#allocation11 + $0x38] sm:$0xff]
    %v541 = vld [vmem:[#allocation11 + $0x40] sm:$0xff]
    %v542 = vld [vmem:[#allocation11 + $0x48] sm:$0xff]
    %v543 = vld [vmem:[#allocation11 + $0x50] sm:$0xff]
    %v544 = vld [vmem:[#allocation11 + $0x58] sm:$0xff]
    %v545 = vld [vmem:[#allocation11 + $0x60] sm:$0xff]
    %v546 = vld [vmem:[#allocation11 + $0x68] sm:$0xff]
    %v547 = vld [vmem:[#allocation11 + $0x70] sm:$0xff]
    %v548 = vld [vmem:[#allocation11 + $0x78] sm:$0xff]
    %v549 = vld [vmem:[#allocation11 + $0x80] sm:$0xff]
    %v550 = vld [vmem:[#allocation11 + $0x88] sm:$0xff]
    %v551 = vld [vmem:[#allocation11 + $0x90] sm:$0xff]
    %v552 = vld [vmem:[#allocation11 + $0x98] sm:$0xff]
    %v553 = vld [vmem:[#allocation11 + $0xa0] sm:$0xff]
    %v554 = vld [vmem:[#allocation11 + $0xa8] sm:$0xff]
    %v555 = vld [vmem:[#allocation11 + $0xb0] sm:$0xff]
    %v556 = vld [vmem:[#allocation11 + $0xb8] sm:$0xff]
    %v557 = vld [vmem:[#allocation11 + $0xc0] sm:$0xff]
    %v558 = vld [vmem:[#allocation11 + $0xc8] sm:$0xff]
    %v559 = vld [vmem:[#allocation11 + $0xd0] sm:$0xff]
    %v560 = vld [vmem:[#allocation11 + $0xd8] sm:$0xff]
    %v561 = vld [vmem:[#allocation11 + $0xe0] sm:$0xff]
    %v562 = vld [vmem:[#allocation11 + $0xe8] sm:$0xff]
    %v563 = vld [vmem:[#allocation11 + $0xf0] sm:$0xff]
    %v564 = vld [vmem:[#allocation11 + $0xf8] sm:$0xff]
    %v565 = vld [vmem:[%s7] sm:$0x3]
    %v567 = vlaneseq
    %v568 = vshrl.u32 %v567, 7
    %v569 = vsub.s32 0, %v568
    %v570 = vrot.slane %v565, %v569
    %v571 = vlaneseq
    %v572 = vshrl.u32 %v571, 7
    %v573 = vsub.s32 1, %v572
    %v574 = vrot.slane %v565, %v573
    %577 = vmatprep.subr.mxu0 %v534
    %578 = vmatpush1.msra.mxu0 %v533
    %579 = vmatprep.subr.mxu0 %v536
    %580 = vmatpush1.msra.mxu0 %v535
    %581 = vmatprep.subr.mxu0 %v538
    %582 = vmatpush1.msra.mxu0 %v537
    %583 = vmatprep.subr.mxu0 %v540
    %584 = vmatpush1.msra.mxu0 %v539
    %585 = vmatprep.subr.mxu0 %v542
    %586 = vmatpush1.msra.mxu0 %v541
    %587 = vmatprep.subr.mxu0 %v544
    %588 = vmatpush1.msra.mxu0 %v543
    %589 = vmatprep.subr.mxu0 %v546
    %590 = vmatpush1.msra.mxu0 %v545
    %591 = vmatprep.subr.mxu0 %v548
    %592 = vmatpush1.msra.mxu0 %v547
    %593 = vmatprep.subr.mxu0 %v550
    %594 = vmatpush1.msra.mxu0 %v549
    %595 = vmatprep.subr.mxu0 %v552
    %596 = vmatpush1.msra.mxu0 %v551
    %597 = vmatprep.subr.mxu0 %v554
    %598 = vmatpush1.msra.mxu0 %v553
    %599 = vmatprep.subr.mxu0 %v556
    %600 = vmatpush1.msra.mxu0 %v555
    %601 = vmatprep.subr.mxu0 %v558
    %602 = vmatpush1.msra.mxu0 %v557
    %603 = vmatprep.subr.mxu0 %v560
    %604 = vmatpush1.msra.mxu0 %v559
    %605 = vmatprep.subr.mxu0 %v562
    %606 = vmatpush1.msra.mxu0 %v561
    %607 = vmatprep.subr.mxu0 %v564
    %608 = vmatpush1.msra.mxu0 %v563
    %609 = vmatprep.subr.mxu0 0.0
    %610 = vmatpush1.msra.mxu0 0.0
    %611 = vmatprep.subr.mxu0 0.0
    %612 = vmatpush1.msra.mxu0 0.0
    %613 = vmatprep.subr.mxu0 0.0
    %614 = vmatpush1.msra.mxu0 0.0
    %615 = vmatprep.subr.mxu0 0.0
    %616 = vmatpush1.msra.mxu0 0.0
    %617 = vmatprep.subr.mxu0 0.0
    %618 = vmatpush1.msra.mxu0 0.0
    %619 = vmatprep.subr.mxu0 0.0
    %620 = vmatpush1.msra.mxu0 0.0
    %621 = vmatprep.subr.mxu0 0.0
    %622 = vmatpush1.msra.mxu0 0.0
    %623 = vmatprep.subr.mxu0 0.0
    %624 = vmatpush1.msra.mxu0 0.0
    %625 = vmatprep.subr.mxu0 0.0
    %626 = vmatpush1.msra.mxu0 0.0
    %627 = vmatprep.subr.mxu0 0.0
    %628 = vmatpush1.msra.mxu0 0.0
    %629 = vmatprep.subr.mxu0 0.0
    %630 = vmatpush1.msra.mxu0 0.0
    %631 = vmatprep.subr.mxu0 0.0
    %632 = vmatpush1.msra.mxu0 0.0
    %633 = vmatprep.subr.mxu0 0.0
    %634 = vmatpush1.msra.mxu0 0.0
    %635 = vmatprep.subr.mxu0 0.0
    %636 = vmatpush1.msra.mxu0 0.0
    %637 = vmatprep.subr.mxu0 0.0
    %638 = vmatpush1.msra.mxu0 0.0
    %639 = vmatprep.subr.mxu0 0.0
    %640 = vmatpush1.msra.mxu0 0.0
    %641 = vmatprep.mubr.f32.mxu0 0.0
    %642 = vmatmul.mubr.f32.gmra.mrb[0].mxu0 %v530
    %v643 = vpop.f32.mrb[0].mxu0
    %v644 = vadd.f32 %v570, %v643
    %v645 = vpop.f32.mrb[0].mxu0
    %v646 = vadd.f32 %v574, %v645
    %647 = vdwg.mxu0
    %648 = vst [vmem:[#allocation13] sm:$0xff] %v644
    %649 = vst [vmem:[#allocation13 + $0x8] sm:$0xff] %v646
    // Predicated region
    $region58: #{tpu_custom_call.1} parent=1 // pred_check
      _
    $region59: #{tpu_custom_call.1} parent=1 // pred_check_branch
      %651 = sbr.rel (0) target = $region61
    $region60: #{tpu_custom_call.1} parent=1 // pred_region
      %s653 = ssub.s32 256, 256
      %654 = vsyncadd [#allocation4], %s653
      %s656 = sshll.u32 [#allocation13], 4
      %s657 = int_to_ptr.vmem [resolvable:$true] %s656
      %659 = dma.vmem_to_hbm [thread:$0]  %s657, 256, %s8, [#allocation4]
    $region61: #{tpu_custom_call.1} parent=1 // pred_fallthru
      _
    // Predicated region
    $region62: #{tpu_custom_call.1} parent=1 // pred_check
      _
    $region63: #{tpu_custom_call.1} parent=1 // pred_check_branch
      %661 = sbr.rel (0) target = $region65
    $region64: #{tpu_custom_call.1} parent=1 // pred_region
      %s663 = ssub.s32 128, 128
      %664 = vsyncadd [#allocation15], %s663
      %s666 = sshll.u32 [#allocation14], 4
      %s667 = int_to_ptr.vmem [resolvable:$true] %s666
      %669 = dma.vmem_to_hbm [thread:$0]  %s667, 128, %s9, [#allocation15]
    $region65: #{tpu_custom_call.1} parent=1 // pred_fallthru
      _
    // Predicated region
    $region66: #{tpu_custom_call.1} parent=1 // pred_check
      _
    $region67: #{tpu_custom_call.1} parent=1 // pred_check_branch
      %671 = sbr.rel (0) target = $region69
    $region68: #{tpu_custom_call.1} parent=1 // pred_region
      %s673 = ssub.s32 128, 128
      %674 = vsyncadd [#allocation15], %s673
      %s676 = sshll.u32 [#allocation16], 4
      %s677 = int_to_ptr.vmem [resolvable:$true] %s676
      %679 = dma.vmem_to_hbm [thread:$0]  %s677, 128, %s10, [#allocation15]
    $region69: #{tpu_custom_call.1} parent=1 // pred_fallthru
      _
    // Predicated region
    $region70: #{tpu_custom_call.1} parent=1 // pred_check
      _
    $region71: #{tpu_custom_call.1} parent=1 // pred_check_branch
      %681 = sbr.rel (0) target = $region73
    $region72: #{tpu_custom_call.1} parent=1 // pred_region
      %682 = dma.done [#allocation4], 256
    $region73: #{tpu_custom_call.1} parent=1 // pred_fallthru
      _
    // Predicated region
    $region74: #{tpu_custom_call.1} parent=1 // pred_check
      _
    $region75: #{tpu_custom_call.1} parent=1 // pred_check_branch
      %684 = sbr.rel (0) target = $region77
    $region76: #{tpu_custom_call.1} parent=1 // pred_region
      %685 = dma.done [#allocation15], 128
    $region77: #{tpu_custom_call.1} parent=1 // pred_fallthru
      _
    // Predicated region
    $region78: #{tpu_custom_call.1} parent=1 // pred_check
      _
    $region79: #{tpu_custom_call.1} parent=1 // pred_check_branch
      %687 = sbr.rel (0) target = $region81
    $region80: #{tpu_custom_call.1} parent=1 // pred_region
      %688 = dma.done [#allocation15], 128
    $region81: #{tpu_custom_call.1} parent=1 // pred_fallthru
      _
    %689 = vsyncpa [#allocation3], 1
    %690 = vsyncpa [#allocation6], 1
    %691 = vsyncpa [#allocation9], 1
    %692 = vsyncpa [#allocation12], 1
    %693 = vsyncpa [#allocation4], 1
    %694 = vsyncpa [#allocation15], 1

</llo_original>
